<compile_context>
chip_gen: v7x
topology: tpu7x:2x2x1
jax: 0.10.0
libtpu: 0.0.40
codegen_flags: <defaults>
</compile_context>

<pallas_src>
import functools

import jax
import jax.numpy as jnp
from jax import lax
from jax.experimental import pallas as pl
from jax.experimental.pallas import tpu as pltpu

LANES = 512                      # lane-dense width (multiple of 128)
ROW_ALIGN = 32                   # covers f32(8) / bf16(16) / int8(32) sublane packing
MAX_TILE_ROWS_WEIGHTED = 2048    # 3 streams: <= 24 MiB of double-buffers
MAX_TILE_ROWS_UNWEIGHTED = 4096  # 2 streams: <= 32 MiB of double-buffers
VMEM_LIMIT_BYTES = 40 * 1024 * 1024


def _round_up(a, b):
    return -(-a // b) * b


def _cdiv(a, b):
    return -(-a // b)


def _representable(cid, dtype):
    """Can a class id ever equal a label of this dtype? (no silent wrap)."""
    d = jnp.dtype(dtype)
    if jnp.issubdtype(d, jnp.integer):
        try:
            ci = int(cid)
        except (TypeError, ValueError):
            return False
        if ci != cid:                      # e.g. float key 1.5 vs int labels
            return False
        info = jnp.iinfo(d)
        return info.min <= ci <= info.max
    return True


def _wmse_kernel(*refs, class_ids, class_wts, rows, tile_m, n_inner, mask_tail):
    """Accumulate sum((pred-tgt)^2 * w) into a per-core (1, 1, LANES) output."""
    if class_ids:
        pred_ref, tgt_ref, lbl_ref, out_ref = refs
    else:
        pred_ref, tgt_ref, out_ref = refs
        lbl_ref = None

    c = pl.program_id(0)            # "parallel" streaming-split axis
    j = pl.program_id(1)            # "arbitrary" reduction axis (last in grid)

    @pl.when(j == 0)
    def _init():
        out_ref[...] = jnp.zeros_like(out_ref)

    diff = pred_ref[...].astype(jnp.float32) - tgt_ref[...].astype(jnp.float32)
    v = diff * diff

    if class_ids:
        # weights = ones; weights[labels == k] = w_k  (static unroll).
        # Masks are disjoint so ordering is irrelevant; compares stay in the
        # streamed label dtype (int8 codes on the ragged path).
        lbl = lbl_ref[...]
        w = jnp.ones_like(v)
        for cid, cw in zip(class_ids, class_wts):
            w = jnp.where(lbl == jnp.asarray(cid, dtype=lbl.dtype),
                          jnp.float32(cw), w)
        v = v * w

    if mask_tail:
        # Last tile does not divide the plane: Pallas pads the block with
        # unspecified data -> zero those rows before reducing.
        blk = c * n_inner + j
        rid = blk * tile_m + lax.broadcasted_iota(jnp.int32, v.shape, 0)
        v = jnp.where(rid < rows, v, 0.0)

    # Reduce the whole tile to one lane-dense row (cross-sublane reduce goes
    # to the otherwise-idle XLU); output block stays resident across j.
    partial = jnp.sum(v, axis=0, keepdims=True)           # (1, LANES)
    out_ref[...] = out_ref[...] + partial[None]            # (1, 1, LANES)


def _layout(rows, max_tile_rows):
    """Pick (tile_m, n_outer, n_inner) with no wasted tiles.

    2-way split only when it divides exactly; if the tile count would be odd
    we first try shrinking the tile (never adds HBM traffic), else run the
    grid sequentially (n_outer = 1).
    """
    tile_m = min(_round_up(max_tile_rows, ROW_ALIGN), _round_up(rows, ROW_ALIGN))
    n_tiles = _cdiv(rows, tile_m)
    if n_tiles >= 2 and n_tiles % 2 == 1:
        cand_tile_m = _round_up(_cdiv(rows, n_tiles + 1), ROW_ALIGN)
        cand_n = _cdiv(rows, cand_tile_m)
        if cand_n % 2 == 0:
            tile_m, n_tiles = cand_tile_m, cand_n
    if n_tiles >= 2 and n_tiles % 2 == 0:
        return tile_m, 2, n_tiles // 2
    return tile_m, 1, n_tiles


def weighted_mse_loss(predictions, targets, class_labels=None,
                      class_weights=None, *, max_tile_rows=None):
    """JAX/Pallas equivalent of WeightedMSELoss.forward."""
    predictions = jnp.asarray(predictions)
    targets = jnp.asarray(targets)
    assert predictions.shape == targets.shape
    total = int(predictions.size)
    if total == 0:
        return jnp.float32(jnp.nan)      # PyTorch mean of empty tensor -> NaN

    weighted = class_labels is not None and bool(class_weights)
    ids, wts = [], []
    if weighted:
        class_labels = jnp.asarray(class_labels)
        assert class_labels.size == total, "class_labels must match predictions"
        for k, wv in class_weights.items():
            if _representable(k, class_labels.dtype):
                ids.append(k)
                wts.append(float(wv))
        weighted = bool(ids)

    if max_tile_rows is None:
        max_tile_rows = MAX_TILE_ROWS_WEIGHTED if weighted else MAX_TILE_ROWS_UNWEIGHTED

    rows = _cdiv(total, LANES)
    tile_m, n_outer, n_inner = _layout(rows, max_tile_rows)
    mask_tail = (rows % tile_m) != 0
    aligned = (total % LANES) == 0

    def to_plane(x):
        flat = jnp.ravel(x)
        if aligned:
            return flat.reshape(rows, LANES)          # free bitcast reshape
        # Ragged total: one minimal pad pass (< LANES zeros appended).
        return jnp.pad(flat, (0, rows * LANES - total)).reshape(rows, LANES)

    operands = [to_plane(predictions), to_plane(targets)]
    kernel_ids, kernel_wts = (), ()
    if weighted:
        if aligned:
            # Free reshape; stream labels in their natural dtype, no extra pass.
            operands.append(jnp.ravel(class_labels).reshape(rows, LANES))
            kernel_ids, kernel_wts = tuple(ids), tuple(wts)
        else:
            # A pad pass is unavoidable here; fold label narrowing into it:
            # encode to int8 class codes 1..K (0 = "no weighted class").
            code_dtype = (jnp.int8 if len(ids) <= 126
                          else jnp.int16 if len(ids) <= 32766 else jnp.int32)
            flat = jnp.ravel(class_labels)
            codes = jnp.zeros(flat.shape, code_dtype)
            for i, cid in enumerate(ids):
                codes = jnp.where(flat == cid, jnp.asarray(i + 1, code_dtype), codes)
            operands.append(
                jnp.pad(codes, (0, rows * LANES - total)).reshape(rows, LANES))
            kernel_ids = tuple(range(1, len(ids) + 1))
            kernel_wts = tuple(wts)

    in_specs = [pl.BlockSpec((tile_m, LANES), lambda c, j: (c * n_inner + j, 0))
                for _ in operands]

    kernel = functools.partial(
        _wmse_kernel, class_ids=kernel_ids, class_wts=kernel_wts,
        rows=rows, tile_m=tile_m, n_inner=n_inner, mask_tail=mask_tail)

    # NOTE: on v7x, verify via xprof that the leading "parallel" axis really
    # shards across the two TensorCores; if not, switch it to
    # pltpu.CORE_PARALLEL.  On 1-TC chips (v5e/v6e) a size-1 or size-2 leading
    # axis just runs sequentially with no wasted tiles.
    partials = pl.pallas_call(
        kernel,
        out_shape=jax.ShapeDtypeStruct((n_outer, 1, LANES), jnp.float32),
        grid_spec=pltpu.PrefetchScalarGridSpec(
            num_scalar_prefetch=0,
            grid=(n_outer, n_inner),
            in_specs=in_specs,
            out_specs=pl.BlockSpec((1, 1, LANES), lambda c, j: (c, 0, 0)),
        ),
        compiler_params=pltpu.CompilerParams(
            dimension_semantics=("parallel", "arbitrary"),
            vmem_limit_bytes=VMEM_LIMIT_BYTES,
        ),
    )(*operands)

    # Tiny final reduce (n_outer * LANES floats) + mean over TRUE element count.
    return jnp.sum(partials) / jnp.float32(total)


def _reference(pred, tgt, lbl, class_weights):
    mse = (pred.astype(jnp.float32) - tgt.astype(jnp.float32)) ** 2
    if lbl is None or not class_weights:
        return jnp.mean(mse)
    w = jnp.ones_like(mse)
    for k, v in class_weights.items():
        w = jnp.where(lbl == k, jnp.float32(v), w)
    return jnp.mean(mse * w)


if __name__ == "__main__":
    key = jax.random.PRNGKey(0)
    k1, k2, k3, k4, k5, k6 = jax.random.split(key, 6)

    class_weights = {0: 1.0, 1: 2.5, 2: 0.5}

    # Case 1: small aligned 2-D batch (16*128 = 4 lane-rows), weighted.
    # Label 3 has no weight entry -> 1.0.
    M, N = 16, 128
    pred = jax.random.normal(k1, (M, N), dtype=jnp.float32)
    tgt = jax.random.normal(k2, (M, N), dtype=jnp.float32)
    lbl = jax.random.randint(k3, (M, N), 0, 4, dtype=jnp.int32)
    out_w = jax.block_until_ready(weighted_mse_loss(pred, tgt, lbl, class_weights))
    ref_w = _reference(pred, tgt, lbl, class_weights)
    assert jnp.allclose(out_w, ref_w, rtol=1e-5, atol=1e-5), (out_w, ref_w)

    # Case 2: unweighted path (class_labels is None) — no label stream at all.
    out_u = jax.block_until_ready(weighted_mse_loss(pred, tgt, None, class_weights))
    ref_u = _reference(pred, tgt, None, class_weights)
    assert jnp.allclose(out_u, ref_u, rtol=1e-5, atol=1e-5), (out_u, ref_u)

    # Case 3: ragged total (7*300 = 2100, not a multiple of 512): minimal pad,
    # int8 label codes, in-kernel tail masking.
    pred_r = jax.random.normal(k4, (7, 300), dtype=jnp.float32)
    tgt_r = jax.random.normal(k5, (7, 300), dtype=jnp.float32)
    lbl_r = jax.random.randint(k6, (7, 300), 0, 4, dtype=jnp.int32)
    out_r = jax.block_until_ready(weighted_mse_loss(pred_r, tgt_r, lbl_r, class_weights))
    ref_r = _reference(pred_r, tgt_r, lbl_r, class_weights)
    assert jnp.allclose(out_r, ref_r, rtol=1e-5, atol=1e-5), (out_r, ref_r)

    # Case 4: odd tile count auto-shrunk to an even 2x2 grid (256 rows, tile 96->64),
    # multi-step resident accumulation, no tail masking.
    pred_b = jax.random.normal(k1, (256, 512), dtype=jnp.float32)
    tgt_b = jax.random.normal(k2, (256, 512), dtype=jnp.float32)
    lbl_b = jax.random.randint(k3, (256, 512), 0, 4, dtype=jnp.int32)
    out_b = jax.block_until_ready(
        weighted_mse_loss(pred_b, tgt_b, lbl_b, class_weights, max_tile_rows=96))
    ref_b = _reference(pred_b, tgt_b, lbl_b, class_weights)
    assert jnp.allclose(out_b, ref_b, rtol=1e-5, atol=1e-5), (out_b, ref_b)

    # Case 5: 2-way split where the second core's tile is partial (40 rows, tile 32).
    pred_c = jax.random.normal(k4, (40, 512), dtype=jnp.float32)
    tgt_c = jax.random.normal(k5, (40, 512), dtype=jnp.float32)
    lbl_c = jax.random.randint(k6, (40, 512), 0, 4, dtype=jnp.int32)
    out_c = jax.block_until_ready(
        weighted_mse_loss(pred_c, tgt_c, lbl_c, class_weights, max_tile_rows=32))
    ref_c = _reference(pred_c, tgt_c, lbl_c, class_weights)
    assert jnp.allclose(out_c, ref_c, rtol=1e-5, atol=1e-5), (out_c, ref_c)

    # Case 6: odd tile count that cannot be evened -> sequential 1x3 grid + tail mask.
    pred_d = jax.random.normal(k2, (65, 512), dtype=jnp.float32)
    tgt_d = jax.random.normal(k3, (65, 512), dtype=jnp.float32)
    lbl_d = jax.random.randint(k1, (65, 512), 0, 4, dtype=jnp.int32)
    out_d = jax.block_until_ready(
        weighted_mse_loss(pred_d, tgt_d, lbl_d, class_weights, max_tile_rows=32))
    ref_d = _reference(pred_d, tgt_d, lbl_d, class_weights)
    assert jnp.allclose(out_d, ref_d, rtol=1e-5, atol=1e-5), (out_d, ref_d)

    print("KERNEL_OK")
</pallas_src>

<mosaic_0001>
module attributes {stable_mosaic.version = 11 : i64} {
  func.func @_wmse_kernel(%arg0: i32, %arg1: i32, %arg2: memref<32x512xf32, #tpu.memory_space<vmem>>, %arg3: memref<32x512xf32, #tpu.memory_space<vmem>>, %arg4: memref<32x512xi32, #tpu.memory_space<vmem>>, %arg5: memref<1x1x512xf32, #tpu.memory_space<vmem>>) attributes {dimension_semantics = [#tpu.dimension_semantics<parallel>, #tpu.dimension_semantics<arbitrary>], iteration_bounds = array<i64: 1, 1>, scalar_prefetch = 0 : i64, scratch_operands = 0 : i64, tpu.core_type = #tpu.core_type<tc>, window_params = [{transform_indices = @transform_0, window_bounds = array<i64: 32, 512>}, {transform_indices = @transform_1, window_bounds = array<i64: 32, 512>}, {transform_indices = @transform_2, window_bounds = array<i64: 32, 512>}, {transform_indices = @transform_3, window_bounds = array<i64: 1, 1, 512>}]} {
    %c0_i32 = arith.constant 0 : i32
    %0 = arith.cmpi eq, %arg1, %c0_i32 : i32
    %1 = arith.extui %0 : i1 to i32
    %c0_i32_0 = arith.constant 0 : i32
    %2 = arith.cmpi ne, %1, %c0_i32_0 : i32
    scf.if %2 {
      %cst_19 = arith.constant 0.000000e+00 : f32
      %38 = vector.broadcast %cst_19 : f32 to vector<1x1x512xf32>
      %c0_20 = arith.constant 0 : index
      %c0_21 = arith.constant 0 : index
      %c0_22 = arith.constant 0 : index
      %39 = vector.load %arg5[%c0_20, %c0_21, %c0_22] : memref<1x1x512xf32, #tpu.memory_space<vmem>>, vector<1x1x512xf32>
      tpu.vector_store %arg5[%c0_20, %c0_21, %c0_22], %38 {strides = array<i32>} : memref<1x1x512xf32, #tpu.memory_space<vmem>>, vector<1x1x512xf32>,
    } else {
    }
    %c0 = arith.constant 0 : index
    %c0_1 = arith.constant 0 : index
    %3 = vector.load %arg2[%c0, %c0_1] : memref<32x512xf32, #tpu.memory_space<vmem>>, vector<32x512xf32>
    %c0_2 = arith.constant 0 : index
    %c0_3 = arith.constant 0 : index
    %4 = vector.load %arg3[%c0_2, %c0_3] : memref<32x512xf32, #tpu.memory_space<vmem>>, vector<32x512xf32>
    %5 = arith.subf %3, %4 : vector<32x512xf32>
    %6 = arith.mulf %5, %5 : vector<32x512xf32>
    %c0_4 = arith.constant 0 : index
    %c0_5 = arith.constant 0 : index
    %7 = vector.load %arg4[%c0_4, %c0_5] : memref<32x512xi32, #tpu.memory_space<vmem>>, vector<32x512xi32>
    %cst = arith.constant 1.000000e+00 : f32
    %8 = vector.broadcast %cst : f32 to vector<32x512xf32>
    %c0_i32_6 = arith.constant 0 : i32
    %9 = vector.broadcast %c0_i32_6 : i32 to vector<32x512xi32>
    %10 = arith.cmpi eq, %7, %9 : vector<32x512xi32>
    %cst_7 = arith.constant 1.000000e+00 : f32
    %11 = vector.broadcast %cst_7 : f32 to vector<32x512xf32>
    %12 = arith.select %10, %11, %8 : vector<32x512xi1>, vector<32x512xf32>
    %c1_i32 = arith.constant 1 : i32
    %13 = vector.broadcast %c1_i32 : i32 to vector<32x512xi32>
    %14 = arith.cmpi eq, %7, %13 : vector<32x512xi32>
    %cst_8 = arith.constant 2.500000e+00 : f32
    %15 = vector.broadcast %cst_8 : f32 to vector<32x512xf32>
    %16 = arith.select %14, %15, %12 : vector<32x512xi1>, vector<32x512xf32>
    %c2_i32 = arith.constant 2 : i32
    %17 = vector.broadcast %c2_i32 : i32 to vector<32x512xi32>
    %18 = arith.cmpi eq, %7, %17 : vector<32x512xi32>
    %cst_9 = arith.constant 5.000000e-01 : f32
    %19 = vector.broadcast %cst_9 : f32 to vector<32x512xf32>
    %20 = arith.select %18, %19, %16 : vector<32x512xi1>, vector<32x512xf32>
    %21 = arith.mulf %6, %20 : vector<32x512xf32>
    %c1_i32_10 = arith.constant 1 : i32
    %22 = arith.muli %arg0, %c1_i32_10 : i32
    %23 = arith.addi %22, %arg1 : i32
    %c32_i32 = arith.constant 32 : i32
    %24 = arith.muli %23, %c32_i32 : i32
    %25 = tpu.iota {dimensions = array<i32: 0>} : vector<32x512xi32>
    %26 = vector.broadcast %24 : i32 to vector<32x512xi32>
    %27 = arith.addi %26, %25 : vector<32x512xi32>
    %c4_i32 = arith.constant 4 : i32
    %28 = vector.broadcast %c4_i32 : i32 to vector<32x512xi32>
    %29 = arith.cmpi slt, %27, %28 : vector<32x512xi32>
    %cst_11 = arith.constant 0.000000e+00 : f32
    %30 = vector.broadcast %cst_11 : f32 to vector<32x512xf32>
    %31 = arith.select %29, %21, %30 : vector<32x512xi1>, vector<32x512xf32>
    %cst_12 = arith.constant dense<0.000000e+00> : vector<512xf32>
    %32 = vector.multi_reduction <add>, %31, %cst_12 [0] : vector<32x512xf32> to vector<512xf32>
    %33 = vector.shape_cast %32 : vector<512xf32> to vector<1x512xf32>
    %c0_13 = arith.constant 0 : index
    %c0_14 = arith.constant 0 : index
    %c0_15 = arith.constant 0 : index
    %34 = vector.load %arg5[%c0_13, %c0_14, %c0_15] : memref<1x1x512xf32, #tpu.memory_space<vmem>>, vector<1x1x512xf32>
    %35 = vector.shape_cast %33 : vector<1x512xf32> to vector<1x1x512xf32>
    %36 = arith.addf %34, %35 : vector<1x1x512xf32>
    %c0_16 = arith.constant 0 : index
    %c0_17 = arith.constant 0 : index
    %c0_18 = arith.constant 0 : index
    %37 = vector.load %arg5[%c0_16, %c0_17, %c0_18] : memref<1x1x512xf32, #tpu.memory_space<vmem>>, vector<1x1x512xf32>
    tpu.vector_store %arg5[%c0_16, %c0_17, %c0_18], %36 {strides = array<i32>} : memref<1x1x512xf32, #tpu.memory_space<vmem>>, vector<1x1x512xf32>,
    return
  }
  func.func @transform_0(%arg0: i32, %arg1: i32) -> (i32, i32) {
    %c1_i32 = arith.constant 1 : i32
    %0 = arith.muli %arg0, %c1_i32 : i32
    %1 = arith.addi %0, %arg1 : i32
    %c0_i32 = arith.constant 0 : i32
    %c0_i32_0 = arith.constant 0 : i32
    return %1, %c0_i32 : i32, i32
  }
  func.func @transform_1(%arg0: i32, %arg1: i32) -> (i32, i32) {
    %c1_i32 = arith.constant 1 : i32
    %0 = arith.muli %arg0, %c1_i32 : i32
    %1 = arith.addi %0, %arg1 : i32
    %c0_i32 = arith.constant 0 : i32
    %c0_i32_0 = arith.constant 0 : i32
    return %1, %c0_i32 : i32, i32
  }
  func.func @transform_2(%arg0: i32, %arg1: i32) -> (i32, i32) {
    %c1_i32 = arith.constant 1 : i32
    %0 = arith.muli %arg0, %c1_i32 : i32
    %1 = arith.addi %0, %arg1 : i32
    %c0_i32 = arith.constant 0 : i32
    %c0_i32_0 = arith.constant 0 : i32
    return %1, %c0_i32 : i32, i32
  }
  func.func @transform_3(%arg0: i32, %arg1: i32) -> (i32, i32, i32) {
    %c0_i32 = arith.constant 0 : i32
    %c0_i32_0 = arith.constant 0 : i32
    %c0_i32_1 = arith.constant 0 : i32
    return %arg0, %c0_i32, %c0_i32_0 : i32, i32, i32
  }
}

</mosaic_0001>

<llo_original>
// kernel: tpu_custom_call.1
$region0: #{tpu_custom_call.1}
  #allocation0 [shape = 'u32[]', space=smem, size = 0x4, offset = 0x4, fixed_abs, tag = 'smem constant byte address 0x4 - core index']
  #allocation1 [shape = 'u32[144,128]{1,0:T(1,128)}', space=vmem, size = 0x12000, scoped, tag = 'internal scratch']
  %s0 = inlined_call_operand.hbm [shape: f32[4,512], index: 0, kind: input, shape index: {}]
  %s1 = inlined_call_operand.hbm [shape: f32[4,512], index: 1, kind: input, shape index: {}]
  %s2 = inlined_call_operand.hbm [shape: s32[4,512], index: 2, kind: input, shape index: {}]
  %s3 = inlined_call_operand.hbm [shape: f32[1,1,512], index: 3, kind: output, shape index: {}]
  %s4 = sld [smem:[#allocation0]]
  $region38: #{tpu_custom_call.1} parent=0
    _
  %s6 = ssub.s32 1, %s4
  %s7 = scalar_select 0, %s6, %s4
  $region1: #{tpu_custom_call.1} parent=0
    #allocation2 [shape = 'u8[65536]{0}', space=vmem, size = 0x10000, scoped, tag = 'input window, operand 0, single buffered']
    #allocation3 [shape = 's32[1]{0}', space=sflag, size = 0x4, scoped, tag = 'scoped memory for tpu_custom_call.1']
    #allocation4 [shape = 's32[1]{0}', space=sflag, size = 0x4, scoped, tag = 'scoped memory for tpu_custom_call.1']
    #allocation5 [shape = 'u8[65536]{0}', space=vmem, size = 0x10000, scoped, tag = 'input window, operand 1, single buffered']
    #allocation6 [shape = 's32[1]{0}', space=sflag, size = 0x4, scoped, tag = 'scoped memory for tpu_custom_call.1']
    #allocation7 [shape = 'u8[65536]{0}', space=vmem, size = 0x10000, scoped, tag = 'input window, operand 2, single buffered']
    #allocation8 [shape = 'u8[2048]{0}', space=vmem, size = 0x800, scoped, tag = 'output window, operand 0, single buffered']
    %8 = vsyncpa [#allocation3], 0
    %9 = vsyncpa [#allocation6], 0
    %10 = vsyncpa [#allocation4], 0
    // Predicated region
    $region2: #{tpu_custom_call.1} parent=1 // pred_check
      _
    $region3: #{tpu_custom_call.1} parent=1 // pred_check_branch
      %12 = sbr.rel (0) target = $region5
    $region4: #{tpu_custom_call.1} parent=1 // pred_region
      %s13 = sadd.s32 0, 0
      %s14 = smul.u32 8, %s13
      %s15 = ssub.s32 1, %s14
      %s16 = smul.u32 64, %s15
      %s17 = smul.u32 %s16, 4
      %s19 = ssub.s32 2048, %s17
      %20 = vsyncadd [#allocation3], %s19
      %p21 = scmp.ne.s32.totalorder 0, %s17
      %s22 = smul.addr %s14, 4
      %s23 = smul.addr %s22, 64
      %s24 = scalar_lea.hbm %s0, %s23
      %s25 = smul.u32 16, %s15
      %s26 = sshll.u32 [#allocation2], 4
      %s27 = int_to_ptr.vmem [resolvable:$true] %s26
      %s28 = sshll.u32 %s25, 4
      %32 = dma.hbm_to_vmem [thread:$0]  (%p21), %s24, %s28, %s27, [#allocation3], 256, 256, 16
    $region5: #{tpu_custom_call.1} parent=1 // pred_fallthru
      _
    // Predicated region
    $region6: #{tpu_custom_call.1} parent=1 // pred_check
      _
    $region7: #{tpu_custom_call.1} parent=1 // pred_check_branch
      %34 = sbr.rel (0) target = $region9
    $region8: #{tpu_custom_call.1} parent=1 // pred_region
      %s35 = sadd.s32 0, 0
      %s36 = smul.u32 8, %s35
      %s37 = ssub.s32 1, %s36
      %s38 = smul.u32 64, %s37
      %s39 = smul.u32 %s38, 4
      %s41 = ssub.s32 2048, %s39
      %42 = vsyncadd [#allocation6], %s41
      %p43 = scmp.ne.s32.totalorder 0, %s39
      %s44 = smul.addr %s36, 4
      %s45 = smul.addr %s44, 64
      %s46 = scalar_lea.hbm %s1, %s45
      %s47 = smul.u32 16, %s37
      %s48 = sshll.u32 [#allocation5], 4
      %s49 = int_to_ptr.vmem [resolvable:$true] %s48
      %s50 = sshll.u32 %s47, 4
      %54 = dma.hbm_to_vmem [thread:$0]  (%p43), %s46, %s50, %s49, [#allocation6], 256, 256, 16
    $region9: #{tpu_custom_call.1} parent=1 // pred_fallthru
      _
    // Predicated region
    $region10: #{tpu_custom_call.1} parent=1 // pred_check
      _
    $region11: #{tpu_custom_call.1} parent=1 // pred_check_branch
      %56 = sbr.rel (0) target = $region13
    $region12: #{tpu_custom_call.1} parent=1 // pred_region
      %s57 = sadd.s32 0, 0
      %s58 = smul.u32 8, %s57
      %s59 = ssub.s32 1, %s58
      %s60 = smul.u32 64, %s59
      %s61 = smul.u32 %s60, 4
      %s63 = ssub.s32 2048, %s61
      %64 = vsyncadd [#allocation6], %s63
      %p65 = scmp.ne.s32.totalorder 0, %s61
      %s66 = smul.addr %s58, 4
      %s67 = smul.addr %s66, 64
      %s68 = scalar_lea.hbm %s2, %s67
      %s69 = smul.u32 16, %s59
      %s70 = sshll.u32 [#allocation7], 4
      %s71 = int_to_ptr.vmem [resolvable:$true] %s70
      %s72 = sshll.u32 %s69, 4
      %76 = dma.hbm_to_vmem [thread:$0]  (%p65), %s68, %s72, %s71, [#allocation6], 256, 256, 16
    $region13: #{tpu_custom_call.1} parent=1 // pred_fallthru
      _
    // Predicated region
    $region14: #{tpu_custom_call.1} parent=1 // pred_check
      _
    $region15: #{tpu_custom_call.1} parent=1 // pred_check_branch
      %78 = sbr.rel (0) target = $region17
    $region16: #{tpu_custom_call.1} parent=1 // pred_region
      %79 = dma.done [#allocation3], 2048
    $region17: #{tpu_custom_call.1} parent=1 // pred_fallthru
      _
    // Predicated region
    $region18: #{tpu_custom_call.1} parent=1 // pred_check
      _
    $region19: #{tpu_custom_call.1} parent=1 // pred_check_branch
      %81 = sbr.rel (0) target = $region21
    $region20: #{tpu_custom_call.1} parent=1 // pred_region
      %82 = dma.done [#allocation6], 2048
    $region21: #{tpu_custom_call.1} parent=1 // pred_fallthru
      _
    // Predicated region
    $region22: #{tpu_custom_call.1} parent=1 // pred_check
      _
    $region23: #{tpu_custom_call.1} parent=1 // pred_check_branch
      %84 = sbr.rel (0) target = $region25
    $region24: #{tpu_custom_call.1} parent=1 // pred_region
      %85 = dma.done [#allocation6], 2048
    $region25: #{tpu_custom_call.1} parent=1 // pred_fallthru
      _
    %s86 = sadd.s32 0, 0
    %s87 = smul.u32 8, %s86
    %s88 = ssub.s32 1, %s87
    %s89 = smul.u32 64, %s88
    %s90 = smul.u32 %s89, 4
    %s91 = sadd.s32 0, 0
    %s92 = smul.u32 8, %s91
    %s93 = ssub.s32 1, %s92
    %s94 = smul.u32 64, %s93
    %s95 = smul.u32 %s94, 4
    %s96 = sadd.s32 0, 0
    %s97 = smul.u32 8, %s96
    %s98 = ssub.s32 1, %s97
    %s99 = smul.u32 64, %s98
    %s100 = smul.u32 %s99, 4
    %p101 = scmp.eq.s32.totalorder 0, 0
    // Predicated region
    $region26: #{tpu_custom_call.1} parent=1 // pred_check
      %p102 = pneg %p101
    $region27: #{tpu_custom_call.1} parent=1 // pred_check_branch
      %104 = sbr.rel (%p102) target = $region29
    $region28: #{tpu_custom_call.1} parent=1 // pred_region
      %v105 = vlaneseq
      %vm106 = vcmp.ge.s32.totalorder %v105, 0
      %vm107 = vcmp.lt.s32.totalorder %v105, 512
      %vm108 = vmand %vm106, %vm107
      %109 = vst.msk [vmem:[#allocation8] sm:$0xf] %vm108, 0.0
    $region29: #{tpu_custom_call.1} parent=1 // pred_fallthru
      _
    %v110 = vld [vmem:[#allocation2] sm:$0xff]
    %v111 = vld [vmem:[#allocation2 + $0x8] sm:$0xff]
    %v112 = vld [vmem:[#allocation2 + $0x10] sm:$0xff]
    %v113 = vld [vmem:[#allocation2 + $0x18] sm:$0xff]
    %v114 = vld [vmem:[#allocation2 + $0x20] sm:$0xff]
    %v115 = vld [vmem:[#allocation2 + $0x28] sm:$0xff]
    %v116 = vld [vmem:[#allocation2 + $0x30] sm:$0xff]
    %v117 = vld [vmem:[#allocation2 + $0x38] sm:$0xff]
    %v118 = vld [vmem:[#allocation2 + $0x40] sm:$0xff]
    %v119 = vld [vmem:[#allocation2 + $0x48] sm:$0xff]
    %v120 = vld [vmem:[#allocation2 + $0x50] sm:$0xff]
    %v121 = vld [vmem:[#allocation2 + $0x58] sm:$0xff]
    %v122 = vld [vmem:[#allocation2 + $0x60] sm:$0xff]
    %v123 = vld [vmem:[#allocation2 + $0x68] sm:$0xff]
    %v124 = vld [vmem:[#allocation2 + $0x70] sm:$0xff]
    %v125 = vld [vmem:[#allocation2 + $0x78] sm:$0xff]
    %v126 = vld [vmem:[#allocation5] sm:$0xff]
    %v127 = vld [vmem:[#allocation5 + $0x8] sm:$0xff]
    %v128 = vld [vmem:[#allocation5 + $0x10] sm:$0xff]
    %v129 = vld [vmem:[#allocation5 + $0x18] sm:$0xff]
    %v130 = vld [vmem:[#allocation5 + $0x20] sm:$0xff]
    %v131 = vld [vmem:[#allocation5 + $0x28] sm:$0xff]
    %v132 = vld [vmem:[#allocation5 + $0x30] sm:$0xff]
    %v133 = vld [vmem:[#allocation5 + $0x38] sm:$0xff]
    %v134 = vld [vmem:[#allocation5 + $0x40] sm:$0xff]
    %v135 = vld [vmem:[#allocation5 + $0x48] sm:$0xff]
    %v136 = vld [vmem:[#allocation5 + $0x50] sm:$0xff]
    %v137 = vld [vmem:[#allocation5 + $0x58] sm:$0xff]
    %v138 = vld [vmem:[#allocation5 + $0x60] sm:$0xff]
    %v139 = vld [vmem:[#allocation5 + $0x68] sm:$0xff]
    %v140 = vld [vmem:[#allocation5 + $0x70] sm:$0xff]
    %v141 = vld [vmem:[#allocation5 + $0x78] sm:$0xff]
    %v142 = vsub.f32 %v110, %v126
    %v143 = vsub.f32 %v111, %v127
    %v144 = vsub.f32 %v112, %v128
    %v145 = vsub.f32 %v113, %v129
    %v146 = vsub.f32 %v114, %v130
    %v147 = vsub.f32 %v115, %v131
    %v148 = vsub.f32 %v116, %v132
    %v149 = vsub.f32 %v117, %v133
    %v150 = vsub.f32 %v118, %v134
    %v151 = vsub.f32 %v119, %v135
    %v152 = vsub.f32 %v120, %v136
    %v153 = vsub.f32 %v121, %v137
    %v154 = vsub.f32 %v122, %v138
    %v155 = vsub.f32 %v123, %v139
    %v156 = vsub.f32 %v124, %v140
    %v157 = vsub.f32 %v125, %v141
    %v158 = vmul.f32 %v142, %v142
    %v159 = vmul.f32 %v143, %v143
    %v160 = vmul.f32 %v144, %v144
    %v161 = vmul.f32 %v145, %v145
    %v162 = vmul.f32 %v146, %v146
    %v163 = vmul.f32 %v147, %v147
    %v164 = vmul.f32 %v148, %v148
    %v165 = vmul.f32 %v149, %v149
    %v166 = vmul.f32 %v150, %v150
    %v167 = vmul.f32 %v151, %v151
    %v168 = vmul.f32 %v152, %v152
    %v169 = vmul.f32 %v153, %v153
    %v170 = vmul.f32 %v154, %v154
    %v171 = vmul.f32 %v155, %v155
    %v172 = vmul.f32 %v156, %v156
    %v173 = vmul.f32 %v157, %v157
    %v174 = vld [vmem:[#allocation7] sm:$0xff]
    %v175 = vld [vmem:[#allocation7 + $0x8] sm:$0xff]
    %v176 = vld [vmem:[#allocation7 + $0x10] sm:$0xff]
    %v177 = vld [vmem:[#allocation7 + $0x18] sm:$0xff]
    %v178 = vld [vmem:[#allocation7 + $0x20] sm:$0xff]
    %v179 = vld [vmem:[#allocation7 + $0x28] sm:$0xff]
    %v180 = vld [vmem:[#allocation7 + $0x30] sm:$0xff]
    %v181 = vld [vmem:[#allocation7 + $0x38] sm:$0xff]
    %v182 = vld [vmem:[#allocation7 + $0x40] sm:$0xff]
    %v183 = vld [vmem:[#allocation7 + $0x48] sm:$0xff]
    %v184 = vld [vmem:[#allocation7 + $0x50] sm:$0xff]
    %v185 = vld [vmem:[#allocation7 + $0x58] sm:$0xff]
    %v186 = vld [vmem:[#allocation7 + $0x60] sm:$0xff]
    %v187 = vld [vmem:[#allocation7 + $0x68] sm:$0xff]
    %v188 = vld [vmem:[#allocation7 + $0x70] sm:$0xff]
    %v189 = vld [vmem:[#allocation7 + $0x78] sm:$0xff]
    %vm190 = vcmp.eq.s32.totalorder %v174, 1
    %vm191 = vcmp.eq.s32.totalorder %v175, 1
    %vm192 = vcmp.eq.s32.totalorder %v176, 1
    %vm193 = vcmp.eq.s32.totalorder %v177, 1
    %vm194 = vcmp.eq.s32.totalorder %v178, 1
    %vm195 = vcmp.eq.s32.totalorder %v179, 1
    %vm196 = vcmp.eq.s32.totalorder %v180, 1
    %vm197 = vcmp.eq.s32.totalorder %v181, 1
    %vm198 = vcmp.eq.s32.totalorder %v182, 1
    %vm199 = vcmp.eq.s32.totalorder %v183, 1
    %vm200 = vcmp.eq.s32.totalorder %v184, 1
    %vm201 = vcmp.eq.s32.totalorder %v185, 1
    %vm202 = vcmp.eq.s32.totalorder %v186, 1
    %vm203 = vcmp.eq.s32.totalorder %v187, 1
    %vm204 = vcmp.eq.s32.totalorder %v188, 1
    %vm205 = vcmp.eq.s32.totalorder %v189, 1
    %v206 = vsel %vm190, 2.5, 1.0
    %v207 = vsel %vm191, 2.5, 1.0
    %v208 = vsel %vm192, 2.5, 1.0
    %v209 = vsel %vm193, 2.5, 1.0
    %v210 = vsel %vm194, 2.5, 1.0
    %v211 = vsel %vm195, 2.5, 1.0
    %v212 = vsel %vm196, 2.5, 1.0
    %v213 = vsel %vm197, 2.5, 1.0
    %v214 = vsel %vm198, 2.5, 1.0
    %v215 = vsel %vm199, 2.5, 1.0
    %v216 = vsel %vm200, 2.5, 1.0
    %v217 = vsel %vm201, 2.5, 1.0
    %v218 = vsel %vm202, 2.5, 1.0
    %v219 = vsel %vm203, 2.5, 1.0
    %v220 = vsel %vm204, 2.5, 1.0
    %v221 = vsel %vm205, 2.5, 1.0
    %vm222 = vcmp.eq.s32.totalorder %v174, 2
    %vm223 = vcmp.eq.s32.totalorder %v175, 2
    %vm224 = vcmp.eq.s32.totalorder %v176, 2
    %vm225 = vcmp.eq.s32.totalorder %v177, 2
    %vm226 = vcmp.eq.s32.totalorder %v178, 2
    %vm227 = vcmp.eq.s32.totalorder %v179, 2
    %vm228 = vcmp.eq.s32.totalorder %v180, 2
    %vm229 = vcmp.eq.s32.totalorder %v181, 2
    %vm230 = vcmp.eq.s32.totalorder %v182, 2
    %vm231 = vcmp.eq.s32.totalorder %v183, 2
    %vm232 = vcmp.eq.s32.totalorder %v184, 2
    %vm233 = vcmp.eq.s32.totalorder %v185, 2
    %vm234 = vcmp.eq.s32.totalorder %v186, 2
    %vm235 = vcmp.eq.s32.totalorder %v187, 2
    %vm236 = vcmp.eq.s32.totalorder %v188, 2
    %vm237 = vcmp.eq.s32.totalorder %v189, 2
    %v238 = vsel %vm222, 0.5, %v206
    %v239 = vsel %vm223, 0.5, %v207
    %v240 = vsel %vm224, 0.5, %v208
    %v241 = vsel %vm225, 0.5, %v209
    %v242 = vsel %vm226, 0.5, %v210
    %v243 = vsel %vm227, 0.5, %v211
    %v244 = vsel %vm228, 0.5, %v212
    %v245 = vsel %vm229, 0.5, %v213
    %v246 = vsel %vm230, 0.5, %v214
    %v247 = vsel %vm231, 0.5, %v215
    %v248 = vsel %vm232, 0.5, %v216
    %v249 = vsel %vm233, 0.5, %v217
    %v250 = vsel %vm234, 0.5, %v218
    %v251 = vsel %vm235, 0.5, %v219
    %v252 = vsel %vm236, 0.5, %v220
    %v253 = vsel %vm237, 0.5, %v221
    %v254 = vmul.f32 %v158, %v238
    %v255 = vmul.f32 %v159, %v239
    %v256 = vmul.f32 %v160, %v240
    %v257 = vmul.f32 %v161, %v241
    %v258 = vmul.f32 %v162, %v242
    %v259 = vmul.f32 %v163, %v243
    %v260 = vmul.f32 %v164, %v244
    %v261 = vmul.f32 %v165, %v245
    %v262 = vmul.f32 %v166, %v246
    %v263 = vmul.f32 %v167, %v247
    %v264 = vmul.f32 %v168, %v248
    %v265 = vmul.f32 %v169, %v249
    %v266 = vmul.f32 %v170, %v250
    %v267 = vmul.f32 %v171, %v251
    %v268 = vmul.f32 %v172, %v252
    %v269 = vmul.f32 %v173, %v253
    %s270 = sadd.s32 0, 0
    %s271 = smul.u32 %s270, 32
    %v272 = vlaneseq
    %v273 = vshrl.u32 %v272, 7
    %v274 = vadd.s32 %v273, 8
    %v275 = vadd.s32 %v273, 16
    %v276 = vadd.s32 %v273, 24
    %v277 = vstv %s271
    %v278 = vadd.s32 %v277, %v273
    %v279 = vadd.s32 %v277, %v274
    %v280 = vadd.s32 %v277, %v275
    %v281 = vadd.s32 %v277, %v276
    %vm282 = vcmp.lt.s32.totalorder %v278, 4
    %vm283 = vcmp.lt.s32.totalorder %v279, 4
    %vm284 = vcmp.lt.s32.totalorder %v280, 4
    %vm285 = vcmp.lt.s32.totalorder %v281, 4
    %v302 = vcombine.low %v254, %v256
    %v303 = vcombine.high %v254, %v256
    %v304 = vcombine.low %v255, %v257
    %v305 = vcombine.high %v255, %v257
    %v306 = vcombine.low %v258, %v260
    %v307 = vcombine.high %v258, %v260
    %v308 = vcombine.low %v259, %v261
    %v309 = vcombine.high %v259, %v261
    %v310 = vcombine.low %v262, %v264
    %v311 = vcombine.high %v262, %v264
    %v312 = vcombine.low %v263, %v265
    %v313 = vcombine.high %v263, %v265
    %v314 = vcombine.low %v266, %v268
    %v315 = vcombine.high %v266, %v268
    %v316 = vcombine.low %v267, %v269
    %v317 = vcombine.high %v267, %v269
    %v334 = vsel %vm282, %v302, 0.0
    %v335 = vsel %vm282, %v303, 0.0
    %v336 = vsel %vm282, %v304, 0.0
    %v337 = vsel %vm282, %v305, 0.0
    %v338 = vsel %vm283, %v306, 0.0
    %v339 = vsel %vm283, %v307, 0.0
    %v340 = vsel %vm283, %v308, 0.0
    %v341 = vsel %vm283, %v309, 0.0
    %v342 = vsel %vm284, %v310, 0.0
    %v343 = vsel %vm284, %v311, 0.0
    %v344 = vsel %vm284, %v312, 0.0
    %v345 = vsel %vm284, %v313, 0.0
    %v346 = vsel %vm285, %v314, 0.0
    %v347 = vsel %vm285, %v315, 0.0
    %v348 = vsel %vm285, %v316, 0.0
    %v349 = vsel %vm285, %v317, 0.0
    %v350 = vadd.f32 %v334, %v338
    %v351 = vadd.f32 %v350, %v342
    %v352 = vadd.f32 %v351, %v346
    %v353 = vrot.slane %v352, 4
    %v354 = vadd.f32 %v352, %v353
    %v355 = vrot.slane %v354, 2
    %v356 = vadd.f32 %v354, %v355
    %v357 = vrot.slane %v356, 1
    %v358 = vadd.f32 %v356, %v357
    %v359 = vadd.f32 %v335, %v339
    %v360 = vadd.f32 %v359, %v343
    %v361 = vadd.f32 %v360, %v347
    %v362 = vrot.slane %v361, 4
    %v363 = vadd.f32 %v361, %v362
    %v364 = vrot.slane %v363, 2
    %v365 = vadd.f32 %v363, %v364
    %v366 = vrot.slane %v365, 1
    %v367 = vadd.f32 %v365, %v366
    %v368 = vadd.f32 %v336, %v340
    %v369 = vadd.f32 %v368, %v344
    %v370 = vadd.f32 %v369, %v348
    %v371 = vrot.slane %v370, 4
    %v372 = vadd.f32 %v370, %v371
    %v373 = vrot.slane %v372, 2
    %v374 = vadd.f32 %v372, %v373
    %v375 = vrot.slane %v374, 1
    %v376 = vadd.f32 %v374, %v375
    %v377 = vadd.f32 %v337, %v341
    %v378 = vadd.f32 %v377, %v345
    %v379 = vadd.f32 %v378, %v349
    %v380 = vrot.slane %v379, 4
    %v381 = vadd.f32 %v379, %v380
    %v382 = vrot.slane %v381, 2
    %v383 = vadd.f32 %v381, %v382
    %v384 = vrot.slane %v383, 1
    %v385 = vadd.f32 %v383, %v384
    %v386 = vld [vmem:[#allocation8] sm:$0xf]
    %v391 = vcombine.low %v358, %v367
    %v392 = vcombine.low %v376, %v385
    %v394 = vunpack.c.l.s4 1966171168
    %v395 = vunpack.c.0.s8 %v394
    %v396 = vlaneseq
    %v397 = vshrl.u32 %v396, 7
    %v398 = vsub.s32 %v395, %v397
    %v399 = vrot.slane %v391, %v398
    %v401 = vunpack.c.l.s4 1966171168
    %v402 = vunpack.c.0.s8 %v401
    %v403 = vlaneseq
    %v404 = vshrl.u32 %v403, 7
    %v405 = vsub.s32 %v402, %v404
    %v406 = vrot.slane %v392, %v405
    %v407 = vcombine.low %v399, %v406
    %v409 = vunpack.c.l.s4 1966171168
    %v410 = vunpack.c.0.s8 %v409
    %v411 = vlaneseq
    %v412 = vshrl.u32 %v411, 7
    %v413 = vsub.s32 %v410, %v412
    %v414 = vrot.slane %v407, %v413
    %v416 = vadd.f32 %v386, %v414
    %v417 = vlaneseq
    %vm418 = vcmp.ge.s32.totalorder %v417, 0
    %vm419 = vcmp.lt.s32.totalorder %v417, 512
    %vm420 = vmand %vm418, %vm419
    %421 = vst.msk [vmem:[#allocation8] sm:$0xf] %vm420, %v416
    // Predicated region
    $region30: #{tpu_custom_call.1} parent=1 // pred_check
      _
    $region31: #{tpu_custom_call.1} parent=1 // pred_check_branch
      %423 = sbr.rel (0) target = $region33
    $region32: #{tpu_custom_call.1} parent=1 // pred_region
      %s425 = ssub.s32 64, 64
      %426 = vsyncadd [#allocation4], %s425
      %s428 = sshll.u32 [#allocation8], 4
      %s429 = int_to_ptr.vmem [resolvable:$true] %s428
      %431 = dma.vmem_to_hbm [thread:$0]  %s429, 64, %s3, [#allocation4]
    $region33: #{tpu_custom_call.1} parent=1 // pred_fallthru
      _
    // Predicated region
    $region34: #{tpu_custom_call.1} parent=1 // pred_check
      _
    $region35: #{tpu_custom_call.1} parent=1 // pred_check_branch
      %433 = sbr.rel (0) target = $region37
    $region36: #{tpu_custom_call.1} parent=1 // pred_region
      %434 = dma.done [#allocation4], 64
    $region37: #{tpu_custom_call.1} parent=1 // pred_fallthru
      _
    %435 = vsyncpa [#allocation3], 1
    %436 = vsyncpa [#allocation6], 1
    %437 = vsyncpa [#allocation4], 1

</llo_original>
